<compile_context>
chip_gen: v5e
topology: v5e:2x2
jax: 0.10.0
libtpu: 0.0.40
codegen_flags: <defaults>
</compile_context>

<pallas_src>
import numpy as np
import jax
import jax.numpy as jnp
from jax.experimental import pallas as pl
from jax.experimental.pallas import tpu as pltpu


def dwconv(x, weight, bias, stride=1):
    """Pallas TPU implementation of DWCONV.forward.

    x:      (B, C, H, W)
    weight: (C, 1, 3, 3)   (PyTorch depthwise Conv2d weight, groups=C, out_channels=C)
    bias:   (C,)
    """
    if stride != 1:
        # TODO(synk): stride > 1 not implemented (module default is stride=1).
        raise NotImplementedError("only stride=1 is supported")
    B, C, H, W = x.shape
    assert weight.shape == (C, 1, 3, 3), weight.shape
    assert bias.shape == (C,), bias.shape
    HW = H * W

    x_flat = x.reshape(B, C, HW).astype(jnp.float32)   # free reshape; H*W stays lane-dense
    w9 = weight.reshape(C, 9).astype(jnp.float32)      # tap k = (dy+1)*3 + (dx+1)
    b2 = bias.reshape(C, 1).astype(jnp.float32)

    def kernel(x_ref, w_ref, b_ref, o_ref):
        # x_ref: (1, C, HW)   w_ref: (C, 9)   b_ref: (C, 1)   o_ref: (1, C, HW)
        X = x_ref[0]                                     # (C, HW) f32, HW lane-dense
        w = w_ref[...]                                   # loaded once, sliced in-vreg below

        # Boundary masks: built once from a single iota, reused by all taps.
        lane = jax.lax.broadcasted_iota(jnp.int32, (C, HW), 1)
        col = lane % W
        not_left = col > 0                               # w - 1 >= 0
        not_right = col < (W - 1)                        # w + 1 <= W - 1
        not_top = lane >= W                              # h - 1 >= 0
        not_bot = lane < (H - 1) * W                     # h + 1 <= H - 1
        row_mask = {-1: not_top, 0: None, 1: not_bot}
        col_mask = {-1: not_left, 0: None, 1: not_right}

        acc = jnp.zeros((C, HW), jnp.float32)
        for k in range(9):                               # unrolled at trace time
            dy, dx = k // 3 - 1, k % 3 - 1
            off = dy * W + dx                            # flattened neighbour offset
            # tap[p] = X[p + off] (circular lane rotate; out-of-image lanes zeroed below)
            tap = X if off == 0 else pltpu.roll(X, shift=(-off) % HW, axis=1)
            m = row_mask[dy]
            if col_mask[dx] is not None:
                m = col_mask[dx] if m is None else jnp.logical_and(m, col_mask[dx])
            if m is not None:
                tap = jnp.where(m, tap, 0.0)
            acc = acc + w[:, k:k + 1] * tap              # per-channel FMA on the VPU
        o_ref[0] = (acc + b_ref[...]).astype(o_ref.dtype)  # lane-dense store

    out = pl.pallas_call(
        kernel,
        out_shape=jax.ShapeDtypeStruct((B, C, HW), jnp.float32),
        grid=(B,),
        in_specs=[
            pl.BlockSpec((1, C, HW), lambda i: (i, 0, 0)),   # one batch per step
            pl.BlockSpec((C, 9), lambda i: (0, 0)),          # per-channel 3x3 weights
            pl.BlockSpec((C, 1), lambda i: (0, 0)),          # bias
        ],
        out_specs=pl.BlockSpec((1, C, HW), lambda i: (i, 0, 0)),
        compiler_params=pltpu.CompilerParams(
            dimension_semantics=("parallel",)),
    )(x_flat, w9, b2)

    return out.reshape(B, C, H, W)


def dwconv_reference(x, weight, bias):
    """Pure-JAX reference mirroring PyTorch's depthwise Conv2d(k=3, s=1, p=1, groups=C)."""
    out = jax.lax.conv_general_dilated(
        x.astype(jnp.float32), weight.astype(jnp.float32),
        window_strides=(1, 1), padding=((1, 1), (1, 1)),
        dimension_numbers=("NCHW", "OIHW", "NCHW"),
        feature_group_count=x.shape[1],
        precision=jax.lax.Precision.HIGHEST)
    return out + bias[None, :, None, None]


if __name__ == "__main__":
    B, C, H, W = 2, 8, 16, 16

    key = jax.random.PRNGKey(0)
    kx, kw, kb = jax.random.split(key, 3)
    x = jax.random.normal(kx, (B, C, H, W), dtype=jnp.float32)
    weight = 0.1 * jax.random.normal(kw, (C, 1, 3, 3), dtype=jnp.float32)
    bias = 0.1 * jax.random.normal(kb, (C,), dtype=jnp.float32)

    out = dwconv(x, weight, bias)
    out = jax.block_until_ready(out)

    ref = dwconv_reference(x, weight, bias)
    np.testing.assert_allclose(np.asarray(out), np.asarray(ref), rtol=1e-5, atol=1e-5)

    print("KERNEL_OK")
</pallas_src>

<mosaic_0001>
module attributes {stable_mosaic.version = 11 : i64} {
  func.func @kernel(%arg0: i32, %arg1: memref<1x8x256xf32, #tpu.memory_space<vmem>>, %arg2: memref<8x9xf32, #tpu.memory_space<vmem>>, %arg3: memref<8x1xf32, #tpu.memory_space<vmem>>, %arg4: memref<1x8x256xf32, #tpu.memory_space<vmem>>) attributes {dimension_semantics = [#tpu.dimension_semantics<parallel>], iteration_bounds = array<i64: 2>, scalar_prefetch = 0 : i64, scratch_operands = 0 : i64, tpu.core_type = #tpu.core_type<tc>, window_params = [{transform_indices = @transform_0, window_bounds = array<i64: 1, 8, 256>}, {pipeline_mode = #tpu.pipeline_mode<synchronous>, transform_indices = @transform_1, window_bounds = array<i64: 8, 9>}, {pipeline_mode = #tpu.pipeline_mode<synchronous>, transform_indices = @transform_2, window_bounds = array<i64: 8, 1>}, {transform_indices = @transform_3, window_bounds = array<i64: 1, 8, 256>}]} {
    %c0 = arith.constant 0 : index
    %c0_0 = arith.constant 0 : index
    %c0_1 = arith.constant 0 : index
    %0 = vector.load %arg1[%c0, %c0_0, %c0_1] : memref<1x8x256xf32, #tpu.memory_space<vmem>>, vector<1x8x256xf32>
    %1 = vector.shape_cast %0 : vector<1x8x256xf32> to vector<8x256xf32>
    %c0_2 = arith.constant 0 : index
    %c0_3 = arith.constant 0 : index
    %2 = vector.load %arg2[%c0_2, %c0_3] : memref<8x9xf32, #tpu.memory_space<vmem>>, vector<8x9xf32>
    %3 = tpu.iota {dimensions = array<i32: 1>} : vector<8x256xi32>
    %c16_i32 = arith.constant 16 : i32
    %c0_i32 = arith.constant 0 : i32
    %4 = arith.cmpi eq, %c16_i32, %c0_i32 : i32
    %c1_i32 = arith.constant 1 : i32
    %5 = arith.select %4, %c1_i32, %c16_i32 : i32
    %6 = vector.broadcast %5 : i32 to vector<8x256xi32>
    %7 = arith.remsi %3, %6 : vector<8x256xi32>
    %c0_i32_4 = arith.constant 0 : i32
    %8 = vector.broadcast %c0_i32_4 : i32 to vector<8x256xi32>
    %9 = arith.cmpi ne, %7, %8 : vector<8x256xi32>
    %c0_i32_5 = arith.constant 0 : i32
    %10 = vector.broadcast %c0_i32_5 : i32 to vector<8x256xi32>
    %11 = arith.cmpi slt, %7, %10 : vector<8x256xi32>
    %c0_i32_6 = arith.constant 0 : i32
    %12 = arith.cmpi slt, %5, %c0_i32_6 : i32
    %13 = vector.broadcast %12 : i1 to vector<8x256xi1>
    %14 = vector.broadcast %13 : vector<8x256xi1> to vector<8x256xi1>
    %15 = arith.xori %11, %14 : vector<8x256xi1>
    %16 = arith.andi %15, %9 : vector<8x256xi1>
    %17 = vector.broadcast %5 : i32 to vector<8x256xi32>
    %18 = arith.addi %7, %17 : vector<8x256xi32>
    %19 = arith.select %16, %18, %7 : vector<8x256xi1>, vector<8x256xi32>
    %c0_i32_7 = arith.constant 0 : i32
    %20 = vector.broadcast %c0_i32_7 : i32 to vector<8x256xi32>
    %21 = arith.cmpi sgt, %19, %20 : vector<8x256xi32>
    %c15_i32 = arith.constant 15 : i32
    %22 = vector.broadcast %c15_i32 : i32 to vector<8x256xi32>
    %23 = arith.cmpi slt, %19, %22 : vector<8x256xi32>
    %c16_i32_8 = arith.constant 16 : i32
    %24 = vector.broadcast %c16_i32_8 : i32 to vector<8x256xi32>
    %25 = arith.cmpi sge, %3, %24 : vector<8x256xi32>
    %c240_i32 = arith.constant 240 : i32
    %26 = vector.broadcast %c240_i32 : i32 to vector<8x256xi32>
    %27 = arith.cmpi slt, %3, %26 : vector<8x256xi32>
    %cst = arith.constant 0.000000e+00 : f32
    %28 = vector.broadcast %cst : f32 to vector<8x256xf32>
    %c17_i32 = arith.constant 17 : i32
    %29 = tpu.dynamic_rotate %1 by %c17_i32 dim 1 : vector<8x256xf32>, i32 -> vector<8x256xf32>
    %30 = arith.andi %25, %21 : vector<8x256xi1>
    %cst_9 = arith.constant 0.000000e+00 : f32
    %31 = vector.broadcast %cst_9 : f32 to vector<8x256xf32>
    %32 = arith.select %30, %29, %31 : vector<8x256xi1>, vector<8x256xf32>
    %33 = vector.extract_strided_slice %2 {offsets = [0, 0], sizes = [8, 1], strides = [1, 1]} : vector<8x9xf32> to vector<8x1xf32>
    %34 = vector.broadcast %33 : vector<8x1xf32> to vector<8x256xf32>
    %35 = arith.mulf %34, %32 : vector<8x256xf32>
    %36 = arith.addf %28, %35 : vector<8x256xf32>
    %c16_i32_10 = arith.constant 16 : i32
    %37 = tpu.dynamic_rotate %1 by %c16_i32_10 dim 1 : vector<8x256xf32>, i32 -> vector<8x256xf32>
    %cst_11 = arith.constant 0.000000e+00 : f32
    %38 = vector.broadcast %cst_11 : f32 to vector<8x256xf32>
    %39 = arith.select %25, %37, %38 : vector<8x256xi1>, vector<8x256xf32>
    %40 = vector.extract_strided_slice %2 {offsets = [0, 1], sizes = [8, 1], strides = [1, 1]} : vector<8x9xf32> to vector<8x1xf32>
    %41 = vector.broadcast %40 : vector<8x1xf32> to vector<8x256xf32>
    %42 = arith.mulf %41, %39 : vector<8x256xf32>
    %43 = arith.addf %36, %42 : vector<8x256xf32>
    %c15_i32_12 = arith.constant 15 : i32
    %44 = tpu.dynamic_rotate %1 by %c15_i32_12 dim 1 : vector<8x256xf32>, i32 -> vector<8x256xf32>
    %45 = arith.andi %25, %23 : vector<8x256xi1>
    %cst_13 = arith.constant 0.000000e+00 : f32
    %46 = vector.broadcast %cst_13 : f32 to vector<8x256xf32>
    %47 = arith.select %45, %44, %46 : vector<8x256xi1>, vector<8x256xf32>
    %48 = vector.extract_strided_slice %2 {offsets = [0, 2], sizes = [8, 1], strides = [1, 1]} : vector<8x9xf32> to vector<8x1xf32>
    %49 = vector.broadcast %48 : vector<8x1xf32> to vector<8x256xf32>
    %50 = arith.mulf %49, %47 : vector<8x256xf32>
    %51 = arith.addf %43, %50 : vector<8x256xf32>
    %c1_i32_14 = arith.constant 1 : i32
    %52 = tpu.dynamic_rotate %1 by %c1_i32_14 dim 1 : vector<8x256xf32>, i32 -> vector<8x256xf32>
    %cst_15 = arith.constant 0.000000e+00 : f32
    %53 = vector.broadcast %cst_15 : f32 to vector<8x256xf32>
    %54 = arith.select %21, %52, %53 : vector<8x256xi1>, vector<8x256xf32>
    %55 = vector.extract_strided_slice %2 {offsets = [0, 3], sizes = [8, 1], strides = [1, 1]} : vector<8x9xf32> to vector<8x1xf32>
    %56 = vector.broadcast %55 : vector<8x1xf32> to vector<8x256xf32>
    %57 = arith.mulf %56, %54 : vector<8x256xf32>
    %58 = arith.addf %51, %57 : vector<8x256xf32>
    %59 = vector.extract_strided_slice %2 {offsets = [0, 4], sizes = [8, 1], strides = [1, 1]} : vector<8x9xf32> to vector<8x1xf32>
    %60 = vector.broadcast %59 : vector<8x1xf32> to vector<8x256xf32>
    %61 = arith.mulf %60, %1 : vector<8x256xf32>
    %62 = arith.addf %58, %61 : vector<8x256xf32>
    %c255_i32 = arith.constant 255 : i32
    %63 = tpu.dynamic_rotate %1 by %c255_i32 dim 1 : vector<8x256xf32>, i32 -> vector<8x256xf32>
    %cst_16 = arith.constant 0.000000e+00 : f32
    %64 = vector.broadcast %cst_16 : f32 to vector<8x256xf32>
    %65 = arith.select %23, %63, %64 : vector<8x256xi1>, vector<8x256xf32>
    %66 = vector.extract_strided_slice %2 {offsets = [0, 5], sizes = [8, 1], strides = [1, 1]} : vector<8x9xf32> to vector<8x1xf32>
    %67 = vector.broadcast %66 : vector<8x1xf32> to vector<8x256xf32>
    %68 = arith.mulf %67, %65 : vector<8x256xf32>
    %69 = arith.addf %62, %68 : vector<8x256xf32>
    %c241_i32 = arith.constant 241 : i32
    %70 = tpu.dynamic_rotate %1 by %c241_i32 dim 1 : vector<8x256xf32>, i32 -> vector<8x256xf32>
    %71 = arith.andi %27, %21 : vector<8x256xi1>
    %cst_17 = arith.constant 0.000000e+00 : f32
    %72 = vector.broadcast %cst_17 : f32 to vector<8x256xf32>
    %73 = arith.select %71, %70, %72 : vector<8x256xi1>, vector<8x256xf32>
    %74 = vector.extract_strided_slice %2 {offsets = [0, 6], sizes = [8, 1], strides = [1, 1]} : vector<8x9xf32> to vector<8x1xf32>
    %75 = vector.broadcast %74 : vector<8x1xf32> to vector<8x256xf32>
    %76 = arith.mulf %75, %73 : vector<8x256xf32>
    %77 = arith.addf %69, %76 : vector<8x256xf32>
    %c240_i32_18 = arith.constant 240 : i32
    %78 = tpu.dynamic_rotate %1 by %c240_i32_18 dim 1 : vector<8x256xf32>, i32 -> vector<8x256xf32>
    %cst_19 = arith.constant 0.000000e+00 : f32
    %79 = vector.broadcast %cst_19 : f32 to vector<8x256xf32>
    %80 = arith.select %27, %78, %79 : vector<8x256xi1>, vector<8x256xf32>
    %81 = vector.extract_strided_slice %2 {offsets = [0, 7], sizes = [8, 1], strides = [1, 1]} : vector<8x9xf32> to vector<8x1xf32>
    %82 = vector.broadcast %81 : vector<8x1xf32> to vector<8x256xf32>
    %83 = arith.mulf %82, %80 : vector<8x256xf32>
    %84 = arith.addf %77, %83 : vector<8x256xf32>
    %c239_i32 = arith.constant 239 : i32
    %85 = tpu.dynamic_rotate %1 by %c239_i32 dim 1 : vector<8x256xf32>, i32 -> vector<8x256xf32>
    %86 = arith.andi %27, %23 : vector<8x256xi1>
    %cst_20 = arith.constant 0.000000e+00 : f32
    %87 = vector.broadcast %cst_20 : f32 to vector<8x256xf32>
    %88 = arith.select %86, %85, %87 : vector<8x256xi1>, vector<8x256xf32>
    %89 = vector.extract_strided_slice %2 {offsets = [0, 8], sizes = [8, 1], strides = [1, 1]} : vector<8x9xf32> to vector<8x1xf32>
    %90 = vector.broadcast %89 : vector<8x1xf32> to vector<8x256xf32>
    %91 = arith.mulf %90, %88 : vector<8x256xf32>
    %92 = arith.addf %84, %91 : vector<8x256xf32>
    %c0_21 = arith.constant 0 : index
    %c0_22 = arith.constant 0 : index
    %93 = vector.load %arg3[%c0_21, %c0_22] : memref<8x1xf32, #tpu.memory_space<vmem>>, vector<8x1xf32>
    %94 = vector.broadcast %93 : vector<8x1xf32> to vector<8x256xf32>
    %95 = arith.addf %92, %94 : vector<8x256xf32>
    %c0_23 = arith.constant 0 : index
    %c0_24 = arith.constant 0 : index
    %c0_25 = arith.constant 0 : index
    %96 = vector.load %arg4[%c0_23, %c0_24, %c0_25] : memref<1x8x256xf32, #tpu.memory_space<vmem>>, vector<1x8x256xf32>
    %97 = vector.shape_cast %96 : vector<1x8x256xf32> to vector<8x256xf32>
    %98 = vector.shape_cast %95 : vector<8x256xf32> to vector<1x8x256xf32>
    tpu.vector_store %arg4[%c0_23, %c0_24, %c0_25], %98 {strides = array<i32>} : memref<1x8x256xf32, #tpu.memory_space<vmem>>, vector<1x8x256xf32>,
    return
  }
  func.func @transform_0(%arg0: i32) -> (i32, i32, i32) {
    %c0_i32 = arith.constant 0 : i32
    %c0_i32_0 = arith.constant 0 : i32
    %c0_i32_1 = arith.constant 0 : i32
    return %arg0, %c0_i32, %c0_i32_0 : i32, i32, i32
  }
  func.func @transform_1(%arg0: i32) -> (i32, i32) {
    %c0_i32 = arith.constant 0 : i32
    %c0_i32_0 = arith.constant 0 : i32
    %c0_i32_1 = arith.constant 0 : i32
    return %c0_i32, %c0_i32_0 : i32, i32
  }
  func.func @transform_2(%arg0: i32) -> (i32, i32) {
    %c0_i32 = arith.constant 0 : i32
    %c0_i32_0 = arith.constant 0 : i32
    %c0_i32_1 = arith.constant 0 : i32
    return %c0_i32, %c0_i32_0 : i32, i32
  }
  func.func @transform_3(%arg0: i32) -> (i32, i32, i32) {
    %c0_i32 = arith.constant 0 : i32
    %c0_i32_0 = arith.constant 0 : i32
    %c0_i32_1 = arith.constant 0 : i32
    return %arg0, %c0_i32, %c0_i32_0 : i32, i32, i32
  }
}

</mosaic_0001>

<llo_original>
// kernel: tpu_custom_call.1
$region0: #{tpu_custom_call.1}
  #allocation0 [shape = 'u32[]', space=smem, size = 0x4, offset = 0x4, fixed_abs, tag = 'smem constant byte address 0x4 - core index']
  #allocation1 [shape = 'u32[72,128]{1,0:T(1,128)}', space=vmem, size = 0x9000, scoped, tag = 'internal scratch']
  %s0 = inlined_call_operand.hbm [shape: f32[2,8,256], index: 0, kind: input, shape index: {}]
  %s1 = inlined_call_operand.vmem [shape: f32[8,9], index: 1, kind: input, shape index: {}]
  %s2 = inlined_call_operand.vmem [shape: f32[8,1], index: 2, kind: input, shape index: {}]
  %s3 = inlined_call_operand.hbm [shape: f32[2,8,256], index: 3, kind: output, shape index: {}]
  %s4 = sld [smem:[#allocation0]]
  $region49: #{tpu_custom_call.1} parent=0
    _
  %s6 = ssub.s32 1, %s4
  %s7 = scalar_select 0, %s6, %s4
  $region1: #{tpu_custom_call.1} parent=0
    #allocation2 [shape = 'u8[16384]{0}', space=vmem, size = 0x4000, scoped, tag = 'input window, operand 0']
    #allocation3 [shape = 's32[2]{0}', space=sflag, size = 0x8, scoped, tag = 'scoped memory for tpu_custom_call.1']
    #allocation4 [shape = 's32[2]{0}', space=sflag, size = 0x8, scoped, tag = 'scoped memory for tpu_custom_call.1']
    #allocation5 [shape = 'u8[16384]{0}', space=vmem, size = 0x4000, scoped, tag = 'output window, operand 0']
    %8 = vsyncpa [#allocation3], 0
    %s9 = scalar_lea.sflag [#allocation3], 1
    %10 = vsyncpa %s9, 0
    %11 = vsyncpa [#allocation4], 0
    %s12 = scalar_lea.sflag [#allocation4], 1
    %13 = vsyncpa %s12, 0
    loop: start=0, step=1, limit=4
    $region2: #{tpu_custom_call.1} parent=1 // loop_pre_header
      _
    $region3: #{tpu_custom_call.1} parent=1 // loop_header
      %s15 = sphi 0, %s19
      %p16 = scmp.ge.s32.totalorder %s15, 4
      %s25 = sphi 0, %s27
      %s28 = sphi 0, %s25
      %s29 = sphi 0, %s28
      %s45 = sphi 0, %s29
      %s49 = sphi 0, %s49
      %s51 = sphi 0, %s49
      %s52 = sphi 0, %s51
      %s66 = sphi 0, %s52
      %s70 = sphi 0, %s70
      %s72 = sphi 0, %s70
      %s73 = sphi 0, %s72
      %s87 = sphi 0, %s73
      %s93 = sphi 0, %s95
      %s96 = sphi 0, %s93
      %s97 = sphi 0, %s96
      %s113 = sphi 0, %s97
    $region4: #{tpu_custom_call.1} parent=1 // loop_header_branch
      %18 = sbr.rel (%p16) target = $region8
    $region5: #{tpu_custom_call.1} parent=1 // loop_body
      %s20 = ssub.s32 %s15, 1
      %s21 = ssub.s32 %s15, 2
      %s22 = sadd.s32 %s15, 1
      %s23 = ssub.s32 %s15, %s22
      %p24 = scmp.eq.s32.totalorder %s23, 0
      %s26 = sadd.s32 %s25, 1
      %s27 = scalar_select %p24, %s25, %s26
      %p30 = pneg %p24
      %p31 = scmp.eq.s32.totalorder %s15, 1
      %p32 = por %p30, %p31
      %p33 = scmp.ne.s32.totalorder %s25, %s28
      %p34 = scmp.eq.s32.totalorder %s15, 0
      %p35 = por %p33, %p34
      %p36 = scmp.ne.s32.totalorder %s25, %s28
      %p37 = scmp.eq.s32.totalorder %s20, 1
      %p38 = por %p36, %p37
      %p39 = scmp.ne.s32.totalorder %s28, %s29
      %p40 = scmp.eq.s32.totalorder %s20, 0
      %p41 = por %p39, %p40
      %p42 = scmp.ne.s32.totalorder %s28, %s29
      %p43 = scmp.eq.s32.totalorder %s21, 1
      %p44 = por %p42, %p43
      %p46 = scmp.ne.s32.totalorder %s29, %s45
      %p47 = scmp.eq.s32.totalorder %s21, 0
      %p48 = por %p46, %p47
      %s50 = sadd.s32 %s49, 1
      %p53 = scmp.eq.s32.totalorder %s15, 1
      %p54 = scmp.ne.s32.totalorder %s49, %s51
      %p55 = scmp.eq.s32.totalorder %s15, 0
      %p56 = por %p54, %p55
      %p57 = scmp.ne.s32.totalorder %s49, %s51
      %p58 = scmp.eq.s32.totalorder %s20, 1
      %p59 = por %p57, %p58
      %p60 = scmp.ne.s32.totalorder %s51, %s52
      %p61 = scmp.eq.s32.totalorder %s20, 0
      %p62 = por %p60, %p61
      %p63 = scmp.ne.s32.totalorder %s51, %s52
      %p64 = scmp.eq.s32.totalorder %s21, 1
      %p65 = por %p63, %p64
      %p67 = scmp.ne.s32.totalorder %s52, %s66
      %p68 = scmp.eq.s32.totalorder %s21, 0
      %p69 = por %p67, %p68
      %s71 = sadd.s32 %s70, 1
      %p74 = scmp.eq.s32.totalorder %s15, 1
      %p75 = scmp.ne.s32.totalorder %s70, %s72
      %p76 = scmp.eq.s32.totalorder %s15, 0
      %p77 = por %p75, %p76
      %p78 = scmp.ne.s32.totalorder %s70, %s72
      %p79 = scmp.eq.s32.totalorder %s20, 1
      %p80 = por %p78, %p79
      %p81 = scmp.ne.s32.totalorder %s72, %s73
      %p82 = scmp.eq.s32.totalorder %s20, 0
      %p83 = por %p81, %p82
      %p84 = scmp.ne.s32.totalorder %s72, %s73
      %p85 = scmp.eq.s32.totalorder %s21, 1
      %p86 = por %p84, %p85
      %p88 = scmp.ne.s32.totalorder %s73, %s87
      %p89 = scmp.eq.s32.totalorder %s21, 0
      %p90 = por %p88, %p89
      %s91 = ssub.s32 %s15, %s22
      %p92 = scmp.eq.s32.totalorder %s91, 0
      %s94 = sadd.s32 %s93, 1
      %s95 = scalar_select %p92, %s93, %s94
      %p98 = pneg %p92
      %p99 = scmp.eq.s32.totalorder %s15, 1
      %p100 = por %p98, %p99
      %p101 = scmp.ne.s32.totalorder %s93, %s96
      %p102 = scmp.eq.s32.totalorder %s15, 0
      %p103 = por %p101, %p102
      %p104 = scmp.ne.s32.totalorder %s93, %s96
      %p105 = scmp.eq.s32.totalorder %s20, 1
      %p106 = por %p104, %p105
      %p107 = scmp.ne.s32.totalorder %s96, %s97
      %p108 = scmp.eq.s32.totalorder %s20, 0
      %p109 = por %p107, %p108
      %p110 = scmp.ne.s32.totalorder %s96, %s97
      %p111 = scmp.eq.s32.totalorder %s21, 1
      %p112 = por %p110, %p111
      %p114 = scmp.ne.s32.totalorder %s97, %s113
      %p115 = scmp.eq.s32.totalorder %s21, 0
      %p116 = por %p114, %p115
      %p117 = scmp.le.s32.totalorder 1, %s15
      %p118 = scmp.lt.s32.totalorder %s15, 3
      %p119 = pnand %p117, %p118
      %p120 = pneg %p119
      // Predicated region
      $region9: #{tpu_custom_call.1} parent=5 // pred_check
        _
      $region10: #{tpu_custom_call.1} parent=5 // pred_check_branch
        %122 = sbr.rel (%p119) target = $region12
      $region11: #{tpu_custom_call.1} parent=5 // pred_region
        %s123 = ssub.s32 %s15, 1
        // Predicated region
        $region13: #{tpu_custom_call.1} parent=11 // pred_check
          %p124 = pneg %p62
        $region14: #{tpu_custom_call.1} parent=11 // pred_check_branch
          %126 = sbr.rel (%p124) target = $region16
        $region15: #{tpu_custom_call.1} parent=11 // pred_region
          _
        $region16: #{tpu_custom_call.1} parent=11 // pred_fallthru
          _
        // Predicated region
        $region17: #{tpu_custom_call.1} parent=11 // pred_check
          %p127 = pneg %p83
        $region18: #{tpu_custom_call.1} parent=11 // pred_check_branch
          %129 = sbr.rel (%p127) target = $region20
        $region19: #{tpu_custom_call.1} parent=11 // pred_region
          _
        $region20: #{tpu_custom_call.1} parent=11 // pred_fallthru
          _
      $region12: #{tpu_custom_call.1} parent=5 // pred_fallthru
        _
      %p130 = scmp.lt.s32.totalorder %s15, 2
      // Predicated region
      $region21: #{tpu_custom_call.1} parent=5 // pred_check
        %p131 = pneg %p130
      $region22: #{tpu_custom_call.1} parent=5 // pred_check_branch
        %133 = sbr.rel (%p131) target = $region24
      $region23: #{tpu_custom_call.1} parent=5 // pred_region
        // Predicated region
        $region25: #{tpu_custom_call.1} parent=23 // pred_check
          %p134 = pneg %p35
        $region26: #{tpu_custom_call.1} parent=23 // pred_check_branch
          %136 = sbr.rel (%p134) target = $region28
        $region27: #{tpu_custom_call.1} parent=23 // pred_region
          %s137 = sand.u32 %s25, 1
          %s138 = scalar_lea.sflag [#allocation3], %s137
          %s139 = sand.u32 %s25, 1
          %s140 = smul.addr %s139, 16
          %s141 = scalar_lea.vmem [#allocation2], %s140
          %143 = vsyncadd %s138, 0
          %s144 = smul.addr %s15, 2
          %s145 = smul.addr %s144, 8
          %s146 = scalar_lea.hbm %s0, %s145
          %s148 = sshll.u32 %s146, 4
          %s149 = int_to_ptr.hbm [resolvable:$true] %s148
          %s150 = sshll.u32 %s141, 4
          %s151 = int_to_ptr.vmem [resolvable:$true] %s150
          %153 = dma.hbm_to_vmem [thread:$0]  %s149, 256, %s151, %s138
        $region28: #{tpu_custom_call.1} parent=23 // pred_fallthru
          _
      $region24: #{tpu_custom_call.1} parent=5 // pred_fallthru
        _
      %p154 = scmp.le.s32.totalorder 1, %s15
      %p155 = scmp.lt.s32.totalorder %s15, 3
      %p156 = pnand %p154, %p155
      %p157 = pneg %p156
      // Predicated region
      $region29: #{tpu_custom_call.1} parent=5 // pred_check
        _
      $region30: #{tpu_custom_call.1} parent=5 // pred_check_branch
        %159 = sbr.rel (%p156) target = $region32
      $region31: #{tpu_custom_call.1} parent=5 // pred_region
        %s160 = ssub.s32 %s15, 1
        %s161 = sand.u32 %s28, 1
        %s162 = scalar_lea.sflag [#allocation3], %s161
        %s163 = sand.u32 %s28, 1
        %s164 = smul.addr %s163, 16
        %s165 = scalar_lea.vmem [#allocation2], %s164
        // Predicated region
        $region33: #{tpu_custom_call.1} parent=31 // pred_check
          %p166 = pneg %p41
        $region34: #{tpu_custom_call.1} parent=31 // pred_check_branch
          %168 = sbr.rel (%p166) target = $region36
        $region35: #{tpu_custom_call.1} parent=31 // pred_region
          %170 = dma.done %s162, 256
        $region36: #{tpu_custom_call.1} parent=31 // pred_fallthru
          _
        %s171 = sand.u32 %s28, 1
        %s172 = scalar_lea.sflag [#allocation3], %s171
        %s173 = sand.u32 %s28, 1
        %s174 = smul.addr %s173, 16
        %s175 = scalar_lea.vmem [#allocation2], %s174
        %p176 = pneg %p41
        %p177 = pneg %p38
        %p178 = pneg %p62
        %p179 = pneg %p59
        %p180 = pneg %p83
        %p181 = pneg %p80
        %p182 = pneg %p109
        %p183 = pneg %p106
        %s184 = sand.u32 %s96, 1
        %s185 = scalar_lea.sflag [#allocation4], %s184
        %s186 = sand.u32 %s96, 1
        %s187 = smul.addr %s186, 16
        %s188 = scalar_lea.vmem [#allocation5], %s187
        %v189 = vld [vmem:[%s165] sm:$0xff]
        %v190 = vld [vmem:[%s165 + $0x8] sm:$0xff]
        %v191 = vld [vmem:[%s1] sm:$0xff]
        %v192 = vlaneseq
        %v193 = vand.u32 %v192, 127
        %v194 = vadd.s32 %v193, 128
        %vm195 = vcmp.lt.s32.totalorder %v193, 0
        %v196 = vsub.s32 0, %v193
        %v197 = vsel %vm195, %v196, %v193
        %v198 = vshrl.u32 %v197, 4
        %v199 = vand.u32 %v197, 15
        %v200 = vsub.s32 0, %v199
        %v201 = vsel %vm195, %v200, %v199
        %vm202 = vcmp.lt.s32.totalorder %v194, 0
        %v203 = vsub.s32 0, %v194
        %v204 = vsel %vm202, %v203, %v194
        %v205 = vshrl.u32 %v204, 4
        %v206 = vand.u32 %v204, 15
        %v207 = vsub.s32 0, %v206
        %v208 = vsel %vm202, %v207, %v206
        %vm209 = vcmp.ne.s32.totalorder %v201, 0
        %vm210 = vcmp.ne.s32.totalorder %v208, 0
        %vm211 = vcmp.lt.s32.totalorder %v201, 0
        %vm212 = vcmp.lt.s32.totalorder %v208, 0
        %vm213 = vmand %vm211, %vm209
        %vm214 = vmand %vm212, %vm210
        %v215 = vadd.s32 %v201, 16
        %v216 = vadd.s32 %v208, 16
        %v217 = vsel %vm213, %v215, %v201
        %v218 = vsel %vm214, %v216, %v208
        %vm219 = vcmp.gt.s32.totalorder %v217, 0
        %vm220 = vcmp.gt.s32.totalorder %v218, 0
        %vm221 = vcmp.lt.s32.totalorder %v217, 15
        %vm222 = vcmp.lt.s32.totalorder %v218, 15
        %vm223 = vcmp.ge.s32.totalorder %v193, 16
        %vm224 = vcmp.ge.s32.totalorder %v194, 16
        %vm225 = vcmp.lt.s32.totalorder %v193, 240
        %vm226 = vcmp.lt.s32.totalorder %v194, 240
        %227 = vrot.lane.b32.xlu0 %v189, 17
        %v228 = vpop.permute.xlu0 %227
        %229 = vrot.lane.b32.xlu0 %v190, 17
        %v230 = vpop.permute.xlu0 %229
        %vm231 = vcmp.lt.s32.totalorder %v193, 17
        %v232 = vsel %vm231, %v228, %v230
        %v233 = vsel %vm231, %v230, %v228
        %vm234 = vmand %vm223, %vm219
        %vm235 = vmand %vm224, %vm220
        %v236 = vsel %vm234, %v233, 0.0
        %v237 = vsel %vm235, %v232, 0.0
        %239 = vset.pattern.permute.xlu0 0
        %240 = vperm.xlu0 %239, %v191
        %v241 = vpop.permute.xlu0 %240
        %v243 = vmul.f32 %v241, %v236
        %v244 = vmul.f32 %v241, %v237
        %v245 = vadd.f32 %v243, 0.0
        %v246 = vadd.f32 %v244, 0.0
        %247 = vrot.lane.b32.xlu0 %v189, 16
        %v248 = vpop.permute.xlu0 %247
        %249 = vrot.lane.b32.xlu0 %v190, 16
        %v250 = vpop.permute.xlu0 %249
        %vm251 = vcmp.lt.s32.totalorder %v193, 16
        %v252 = vsel %vm251, %v248, %v250
        %v253 = vsel %vm251, %v250, %v248
        %v254 = vsel %vm223, %v253, 0.0
        %v255 = vsel %vm224, %v252, 0.0
        %256 = vset.pattern.permute.xlu0 1
        %257 = vperm.xlu0 %256, %v191
        %v258 = vpop.permute.xlu0 %257
        %v260 = vmul.f32 %v258, %v254
        %v261 = vmul.f32 %v258, %v255
        %v262 = vadd.f32 %v245, %v260
        %v263 = vadd.f32 %v246, %v261
        %264 = vrot.lane.b32.xlu0 %v189, 15
        %v265 = vpop.permute.xlu0 %264
        %266 = vrot.lane.b32.xlu0 %v190, 15
        %v267 = vpop.permute.xlu0 %266
        %vm268 = vcmp.lt.s32.totalorder %v193, 15
        %v269 = vsel %vm268, %v265, %v267
        %v270 = vsel %vm268, %v267, %v265
        %vm271 = vmand %vm223, %vm221
        %vm272 = vmand %vm224, %vm222
        %v273 = vsel %vm271, %v270, 0.0
        %v274 = vsel %vm272, %v269, 0.0
        %275 = vset.pattern.permute.xlu0 2
        %276 = vperm.xlu0 %275, %v191
        %v277 = vpop.permute.xlu0 %276
        %v279 = vmul.f32 %v277, %v273
        %v280 = vmul.f32 %v277, %v274
        %v281 = vadd.f32 %v262, %v279
        %v282 = vadd.f32 %v263, %v280
        %283 = vrot.lane.b32.xlu0 %v189, 1
        %v284 = vpop.permute.xlu0 %283
        %285 = vrot.lane.b32.xlu0 %v190, 1
        %v286 = vpop.permute.xlu0 %285
        %vm287 = vcmp.lt.s32.totalorder %v193, 1
        %v288 = vsel %vm287, %v284, %v286
        %v289 = vsel %vm287, %v286, %v284
        %v290 = vsel %vm219, %v289, 0.0
        %v291 = vsel %vm220, %v288, 0.0
        %292 = vset.pattern.permute.xlu0 3
        %293 = vperm.xlu0 %292, %v191
        %v294 = vpop.permute.xlu0 %293
        %v296 = vmul.f32 %v294, %v290
        %v297 = vmul.f32 %v294, %v291
        %v298 = vadd.f32 %v281, %v296
        %v299 = vadd.f32 %v282, %v297
        %300 = vset.pattern.permute.xlu0 4
        %301 = vperm.xlu0 %300, %v191
        %v302 = vpop.permute.xlu0 %301
        %v304 = vmul.f32 %v302, %v189
        %v305 = vmul.f32 %v302, %v190
        %v306 = vadd.f32 %v298, %v304
        %v307 = vadd.f32 %v299, %v305
        %308 = vrot.lane.b32.xlu0 %v189, 127
        %v309 = vpop.permute.xlu0 %308
        %310 = vrot.lane.b32.xlu0 %v190, 127
        %v311 = vpop.permute.xlu0 %310
        %vm312 = vcmp.lt.s32.totalorder %v193, 127
        %v313 = vsel %vm312, %v309, %v311
        %v314 = vsel %vm312, %v311, %v309
        %v315 = vsel %vm221, %v313, 0.0
        %v316 = vsel %vm222, %v314, 0.0
        %317 = vset.pattern.permute.xlu0 5
        %318 = vperm.xlu0 %317, %v191
        %v319 = vpop.permute.xlu0 %318
        %v321 = vmul.f32 %v319, %v315
        %v322 = vmul.f32 %v319, %v316
        %v323 = vadd.f32 %v306, %v321
        %v324 = vadd.f32 %v307, %v322
        %325 = vrot.lane.b32.xlu0 %v189, 113
        %v326 = vpop.permute.xlu0 %325
        %327 = vrot.lane.b32.xlu0 %v190, 113
        %v328 = vpop.permute.xlu0 %327
        %vm329 = vcmp.lt.s32.totalorder %v193, 113
        %v330 = vsel %vm329, %v326, %v328
        %v331 = vsel %vm329, %v328, %v326
        %vm332 = vmand %vm225, %vm219
        %vm333 = vmand %vm226, %vm220
        %v334 = vsel %vm332, %v330, 0.0
        %v335 = vsel %vm333, %v331, 0.0
        %336 = vset.pattern.permute.xlu0 6
        %337 = vperm.xlu0 %336, %v191
        %v338 = vpop.permute.xlu0 %337
        %v340 = vmul.f32 %v338, %v334
        %v341 = vmul.f32 %v338, %v335
        %v342 = vadd.f32 %v323, %v340
        %v343 = vadd.f32 %v324, %v341
        %344 = vrot.lane.b32.xlu0 %v189, 112
        %v345 = vpop.permute.xlu0 %344
        %346 = vrot.lane.b32.xlu0 %v190, 112
        %v347 = vpop.permute.xlu0 %346
        %vm348 = vcmp.lt.s32.totalorder %v193, 112
        %v349 = vsel %vm348, %v345, %v347
        %v350 = vsel %vm348, %v347, %v345
        %v351 = vsel %vm225, %v349, 0.0
        %v352 = vsel %vm226, %v350, 0.0
        %353 = vset.pattern.permute.xlu0 7
        %354 = vperm.xlu0 %353, %v191
        %v355 = vpop.permute.xlu0 %354
        %v357 = vmul.f32 %v355, %v351
        %v358 = vmul.f32 %v355, %v352
        %v359 = vadd.f32 %v342, %v357
        %v360 = vadd.f32 %v343, %v358
        %361 = vrot.lane.b32.xlu0 %v189, 111
        %v362 = vpop.permute.xlu0 %361
        %363 = vrot.lane.b32.xlu0 %v190, 111
        %v364 = vpop.permute.xlu0 %363
        %vm365 = vcmp.lt.s32.totalorder %v193, 111
        %v366 = vsel %vm365, %v362, %v364
        %v367 = vsel %vm365, %v364, %v362
        %vm368 = vmand %vm225, %vm221
        %vm369 = vmand %vm226, %vm222
        %v370 = vsel %vm368, %v366, 0.0
        %v371 = vsel %vm369, %v367, 0.0
        %372 = vset.pattern.permute.xlu0 8
        %373 = vperm.xlu0 %372, %v191
        %v374 = vpop.permute.xlu0 %373
        %v376 = vmul.f32 %v374, %v370
        %v377 = vmul.f32 %v374, %v371
        %v378 = vadd.f32 %v359, %v376
        %v379 = vadd.f32 %v360, %v377
        %v380 = vld [vmem:[%s2] sm:$0xff]
        %382 = vset.pattern.permute.xlu0 0
        %383 = vperm.xlu0 %382, %v380
        %v384 = vpop.permute.xlu0 %383
        %v386 = vadd.f32 %v378, %v384
        %v387 = vadd.f32 %v379, %v384
        %388 = vst [vmem:[%s188] sm:$0xff] %v386
        %389 = vst [vmem:[%s188 + $0x8] sm:$0xff] %v387
        %s390 = sand.u32 %s96, 1
        %s391 = scalar_lea.sflag [#allocation4], %s390
        %s392 = sand.u32 %s96, 1
        %s393 = smul.addr %s392, 16
        %s394 = scalar_lea.vmem [#allocation5], %s393
        // Predicated region
        $region37: #{tpu_custom_call.1} parent=31 // pred_check
          %p395 = pneg %p106
        $region38: #{tpu_custom_call.1} parent=31 // pred_check_branch
          %397 = sbr.rel (%p395) target = $region40
        $region39: #{tpu_custom_call.1} parent=31 // pred_region
          %399 = vsyncadd %s391, 0
          %s400 = smul.addr %s20, 2
          %s401 = smul.addr %s400, 8
          %s402 = scalar_lea.hbm %s3, %s401
          %s404 = sshll.u32 %s394, 4
          %s405 = int_to_ptr.vmem [resolvable:$true] %s404
          %s406 = sshll.u32 %s402, 4
          %s407 = int_to_ptr.hbm [resolvable:$true] %s406
          %409 = dma.vmem_to_hbm [thread:$0]  %s405, 256, %s407, %s391
        $region40: #{tpu_custom_call.1} parent=31 // pred_fallthru
          _
      $region32: #{tpu_custom_call.1} parent=5 // pred_fallthru
        _
      %p410 = scmp.le.s32.totalorder 2, %s15
      // Predicated region
      $region41: #{tpu_custom_call.1} parent=5 // pred_check
        %p411 = pneg %p410
      $region42: #{tpu_custom_call.1} parent=5 // pred_check_branch
        %413 = sbr.rel (%p411) target = $region44
      $region43: #{tpu_custom_call.1} parent=5 // pred_region
        %s414 = ssub.s32 %s15, 2
        // Predicated region
        $region45: #{tpu_custom_call.1} parent=43 // pred_check
          %p415 = pneg %p112
        $region46: #{tpu_custom_call.1} parent=43 // pred_check_branch
          %417 = sbr.rel (%p415) target = $region48
        $region47: #{tpu_custom_call.1} parent=43 // pred_region
          %s418 = sand.u32 %s97, 1
          %s419 = scalar_lea.sflag [#allocation4], %s418
          %s420 = sand.u32 %s97, 1
          %s421 = smul.addr %s420, 16
          %s422 = scalar_lea.vmem [#allocation5], %s421
          %424 = dma.done %s419, 256
        $region48: #{tpu_custom_call.1} parent=43 // pred_fallthru
          _
      $region44: #{tpu_custom_call.1} parent=5 // pred_fallthru
        _
    $region6: #{tpu_custom_call.1} parent=1 // loop_footer
      %s19 = sadd.s32 1, %s15
    $region7: #{tpu_custom_call.1} parent=1 // loop_footer_branch
      %14 = sbr.rel target = $region3
    $region8: #{tpu_custom_call.1} parent=1 // loop_exit
      _
    %425 = vsyncpa [#allocation3], 1
    %s426 = scalar_lea.sflag [#allocation3], 1
    %427 = vsyncpa %s426, 1
    %428 = vsyncpa [#allocation4], 1
    %s429 = scalar_lea.sflag [#allocation4], 1
    %430 = vsyncpa %s429, 1

</llo_original>
